<compile_context>
chip_gen: v5e
topology: v5e:2x2
jax: 0.10.0
libtpu: 0.0.40
codegen_flags: <defaults>
</compile_context>

<pallas_src>
import math

import jax
import jax.numpy as jnp
from jax.experimental import pallas as pl
from jax.experimental.pallas import tpu as pltpu

EPS_GIN = 0.0   # GINConv default eps (train_eps=False)
BN_EPS = 1e-5   # BatchNorm1d default eps
LANE = 128      # pad every feature dim to the 128-lane vreg width


# ----------------------------- Pallas kernel -----------------------------

def make_fused_gin_kernel(n_layers):
    """Build a fused kernel: n_layers GINConv layers + (lin1,relu,lin2,sigmoid)."""

    def kernel(*refs):
        # refs = [a, x, (w1,b1,gamma,beta,w2,b2) * n_layers, hw1,hb1,hw2,hb2, out]
        a_ref, x_ref = refs[0], refs[1]
        layer_refs = refs[2:2 + 6 * n_layers]
        hw1_ref, hb1_ref, hw2_ref, hb2_ref = refs[2 + 6 * n_layers:-1]
        o_ref = refs[-1]

        a = a_ref[...]                         # bf16 [N, N], loaded once
        h = x_ref[...].astype(jnp.float32)     # f32  [N, F_pad]

        for l in range(n_layers):
            w1, b1, g, be, w2, b2 = layer_refs[6 * l: 6 * l + 6]
            # GIN aggregation: (1 + eps) * h + A @ h   (bf16 MXU, f32 accumulate)
            agg = jnp.dot(a, h.astype(jnp.bfloat16),
                          preferred_element_type=jnp.float32)
            h = agg + (1.0 + EPS_GIN) * h
            # Linear 1
            y = jnp.dot(h.astype(jnp.bfloat16), w1[...],
                        preferred_element_type=jnp.float32) + b1[...]
            # BatchNorm1d (training-mode batch statistics over the node axis).
            # Per-column stats, so zero padded lanes never contaminate real lanes.
            mean = jnp.mean(y, axis=0, keepdims=True)
            var = jnp.mean(jnp.square(y - mean), axis=0, keepdims=True)
            y = (y - mean) * jax.lax.rsqrt(var + BN_EPS) * g[...] + be[...]
            y = jnp.maximum(y, 0.0)
            # Linear 2 + ReLU
            z = jnp.dot(y.astype(jnp.bfloat16), w2[...],
                        preferred_element_type=jnp.float32) + b2[...]
            h = jnp.maximum(z, 0.0)

        # Head: lin1 -> relu -> lin2 -> sigmoid
        y = jnp.dot(h.astype(jnp.bfloat16), hw1_ref[...],
                    preferred_element_type=jnp.float32) + hb1_ref[...]
        y = jnp.maximum(y, 0.0)
        z = jnp.dot(y.astype(jnp.bfloat16), hw2_ref[...],
                    preferred_element_type=jnp.float32) + hb2_ref[...]
        # sigmoid; approx reciprocal runs on the EUP slot, clamp guards approx error.
        sig = pl.reciprocal(1.0 + jnp.exp(-z), approx=True)
        o_ref[...] = jnp.clip(sig, 0.0, 1.0)

    return kernel


def _vmem_spec():
    # Whole-array blocks resident in VMEM (all operands are tiny here).
    return pl.BlockSpec(memory_space=pltpu.MemorySpace.VMEM)


# ----------------------------- parameter setup -----------------------------

def linear_params(key, fan_in, fan_out):
    """PyTorch-default Linear init: U(-1/sqrt(fan_in), 1/sqrt(fan_in))."""
    kw, kb = jax.random.split(key)
    bound = 1.0 / math.sqrt(fan_in)
    w = jax.random.uniform(kw, (fan_in, fan_out), jnp.float32, -bound, bound)
    b = jax.random.uniform(kb, (1, fan_out), jnp.float32, -bound, bound)
    return w, b


def init_params(key, n_feat, n_hidden, n_emb, n_class, n_layers):
    params = {"convs": []}
    dims_in = [n_feat] + [n_hidden] * (n_layers - 1)
    k = key
    for d_in in dims_in:
        k, k1, k2 = jax.random.split(k, 3)
        w1, b1 = linear_params(k1, d_in, n_hidden)
        w2, b2 = linear_params(k2, n_hidden, n_hidden)
        params["convs"].append({
            "w1": w1, "b1": b1,
            "gamma": jnp.ones((1, n_hidden), jnp.float32),   # BN weight
            "beta": jnp.zeros((1, n_hidden), jnp.float32),   # BN bias
            "w2": w2, "b2": b2,
        })
    k, k1, k2 = jax.random.split(k, 3)
    w1, b1 = linear_params(k1, n_hidden, n_emb)
    w2, b2 = linear_params(k2, n_emb, n_class)
    params["head"] = {"w1": w1, "b1": b1, "w2": w2, "b2": b2}
    return params


def _rup(n, m=LANE):
    return ((n + m - 1) // m) * m


def _pad2(x, rows, cols):
    return jnp.pad(x, ((0, rows - x.shape[0]), (0, cols - x.shape[1])))


def prepare_params(params):
    """Zero-pad all feature dims to 128 lanes; weights to bf16, biases/BN to f32.

    Padded lanes carry weight=0, bias=0, gamma=0, beta=0 so they remain exactly
    zero through every layer and never affect the real lanes.
    """
    def padw(w):
        return _pad2(w, _rup(w.shape[0]), _rup(w.shape[1])).astype(jnp.bfloat16)

    def padv(v):
        return _pad2(v, 1, _rup(v.shape[1])).astype(jnp.float32)

    out = {"convs": []}
    for c in params["convs"]:
        out["convs"].append({
            "w1": padw(c["w1"]), "b1": padv(c["b1"]),
            "gamma": padv(c["gamma"]), "beta": padv(c["beta"]),
            "w2": padw(c["w2"]), "b2": padv(c["b2"]),
        })
    h = params["head"]
    out["head"] = {"w1": padw(h["w1"]), "b1": padv(h["b1"]),
                   "w2": padw(h["w2"]), "b2": padv(h["b2"])}
    return out


# ----------------------------- forward (glue) -----------------------------

def gin_forward(params, x, edge_index):
    n = x.shape[0]
    n_layers = len(params["convs"])
    n_class = params["head"]["w2"].shape[1]

    # Dense adjacency: A[dst, src] counts parallel edges (GIN 'add' aggregation).
    # bf16 is exact for small integer edge multiplicities.
    a = jnp.zeros((n, n), jnp.float32).at[edge_index[1], edge_index[0]].add(1.0)
    a = a.astype(jnp.bfloat16)

    # Lane-pad node features and all parameters once.
    x_pad = _pad2(x.astype(jnp.float32), n, _rup(x.shape[1]))
    pp = prepare_params(params)

    flat_args = [a, x_pad]
    for c in pp["convs"]:
        flat_args += [c["w1"], c["b1"], c["gamma"], c["beta"], c["w2"], c["b2"]]
    hd = pp["head"]
    flat_args += [hd["w1"], hd["b1"], hd["w2"], hd["b2"]]

    out_pad = pl.pallas_call(
        make_fused_gin_kernel(n_layers),
        out_shape=jax.ShapeDtypeStruct((n, _rup(n_class)), jnp.float32),
        in_specs=[_vmem_spec()] * len(flat_args),
        out_specs=_vmem_spec(),
        compiler_params=pltpu.CompilerParams(vmem_limit_bytes=32 * 1024 * 1024),
    )(*flat_args)

    # Slice back to the real class columns (padded cols hold sigmoid(0)=0.5).
    return out_pad[:, :n_class]


if __name__ == "__main__":
    # Small shapes consistent with the module.
    N_NODES, N_EDGES = 16, 48
    N_FEAT, N_HIDDEN, N_EMB, N_CLASS, N_LAYERS = 8, 32, 16, 4, 3

    key = jax.random.PRNGKey(0)
    kx, ke, kp = jax.random.split(key, 3)

    x = jax.random.normal(kx, (N_NODES, N_FEAT), jnp.float32)
    edge_index = jax.random.randint(ke, (2, N_EDGES), 0, N_NODES, dtype=jnp.int32)

    params = init_params(kp, N_FEAT, N_HIDDEN, N_EMB, N_CLASS, N_LAYERS)

    out = jax.jit(gin_forward)(params, x, edge_index)
    out = jax.block_until_ready(out)

    assert out.shape == (N_NODES, N_CLASS)
    assert bool(jnp.all(jnp.isfinite(out)))
    assert bool(jnp.all((out >= 0.0) & (out <= 1.0)))  # sigmoid range
    print("KERNEL_OK")
</pallas_src>

<mosaic_0001>
module attributes {stable_mosaic.version = 11 : i64} {
  func.func @kernel(%arg0: memref<16x16xbf16, #tpu.memory_space<vmem>>, %arg1: memref<16x128xf32, #tpu.memory_space<vmem>>, %arg2: memref<128x128xbf16, #tpu.memory_space<vmem>>, %arg3: memref<1x128xf32, #tpu.memory_space<vmem>>, %arg4: memref<1x128xf32, #tpu.memory_space<vmem>>, %arg5: memref<1x128xf32, #tpu.memory_space<vmem>>, %arg6: memref<128x128xbf16, #tpu.memory_space<vmem>>, %arg7: memref<1x128xf32, #tpu.memory_space<vmem>>, %arg8: memref<128x128xbf16, #tpu.memory_space<vmem>>, %arg9: memref<1x128xf32, #tpu.memory_space<vmem>>, %arg10: memref<1x128xf32, #tpu.memory_space<vmem>>, %arg11: memref<1x128xf32, #tpu.memory_space<vmem>>, %arg12: memref<128x128xbf16, #tpu.memory_space<vmem>>, %arg13: memref<1x128xf32, #tpu.memory_space<vmem>>, %arg14: memref<128x128xbf16, #tpu.memory_space<vmem>>, %arg15: memref<1x128xf32, #tpu.memory_space<vmem>>, %arg16: memref<1x128xf32, #tpu.memory_space<vmem>>, %arg17: memref<1x128xf32, #tpu.memory_space<vmem>>, %arg18: memref<128x128xbf16, #tpu.memory_space<vmem>>, %arg19: memref<1x128xf32, #tpu.memory_space<vmem>>, %arg20: memref<128x128xbf16, #tpu.memory_space<vmem>>, %arg21: memref<1x128xf32, #tpu.memory_space<vmem>>, %arg22: memref<128x128xbf16, #tpu.memory_space<vmem>>, %arg23: memref<1x128xf32, #tpu.memory_space<vmem>>, %arg24: memref<16x128xf32, #tpu.memory_space<vmem>>) attributes {dimension_semantics = [], scalar_prefetch = 0 : i64, scratch_operands = 0 : i64, tpu.core_type = #tpu.core_type<tc>} {
    %c0 = arith.constant 0 : index
    %c0_0 = arith.constant 0 : index
    %0 = vector.load %arg0[%c0, %c0_0] : memref<16x16xbf16, #tpu.memory_space<vmem>>, vector<16x16xbf16>
    %c0_1 = arith.constant 0 : index
    %c0_2 = arith.constant 0 : index
    %1 = vector.load %arg1[%c0_1, %c0_2] : memref<16x128xf32, #tpu.memory_space<vmem>>, vector<16x128xf32>
    %2 = arith.truncf %1 : vector<16x128xf32> to vector<16x128xbf16>
    %cst = arith.constant dense<0.000000e+00> : vector<16x128xf32>
    %3 = tpu.matmul %0, %2, %cst {dimension_numbers = #tpu.dot_dimension_numbers<[1], [0], [0], [1], [0, 0, 1, 1], [], []>} : vector<16x16xbf16>, vector<16x128xbf16>, vector<16x128xf32> -> vector<16x128xf32>
    %cst_3 = arith.constant 1.000000e+00 : f32
    %4 = vector.broadcast %cst_3 : f32 to vector<16x128xf32>
    %5 = arith.mulf %4, %1 : vector<16x128xf32>
    %6 = arith.addf %3, %5 : vector<16x128xf32>
    %7 = arith.truncf %6 : vector<16x128xf32> to vector<16x128xbf16>
    %c0_4 = arith.constant 0 : index
    %c0_5 = arith.constant 0 : index
    %8 = vector.load %arg2[%c0_4, %c0_5] : memref<128x128xbf16, #tpu.memory_space<vmem>>, vector<128x128xbf16>
    %cst_6 = arith.constant dense<0.000000e+00> : vector<16x128xf32>
    %9 = tpu.matmul %7, %8, %cst_6 {dimension_numbers = #tpu.dot_dimension_numbers<[1], [0], [0], [1], [0, 0, 1, 1], [], []>} : vector<16x128xbf16>, vector<128x128xbf16>, vector<16x128xf32> -> vector<16x128xf32>
    %c0_7 = arith.constant 0 : index
    %c0_8 = arith.constant 0 : index
    %10 = vector.load %arg3[%c0_7, %c0_8] : memref<1x128xf32, #tpu.memory_space<vmem>>, vector<1x128xf32>
    %11 = vector.broadcast %10 : vector<1x128xf32> to vector<16x128xf32>
    %12 = arith.addf %9, %11 : vector<16x128xf32>
    %cst_9 = arith.constant dense<0.000000e+00> : vector<128xf32>
    %13 = vector.multi_reduction <add>, %12, %cst_9 [0] : vector<16x128xf32> to vector<128xf32>
    %14 = vector.shape_cast %13 : vector<128xf32> to vector<1x128xf32>
    %cst_10 = arith.constant 1.600000e+01 : f32
    %15 = vector.broadcast %cst_10 : f32 to vector<1x128xf32>
    %16 = arith.divf %14, %15 : vector<1x128xf32>
    %17 = vector.broadcast %16 : vector<1x128xf32> to vector<16x128xf32>
    %18 = arith.subf %12, %17 : vector<16x128xf32>
    %19 = arith.mulf %18, %18 : vector<16x128xf32>
    %cst_11 = arith.constant dense<0.000000e+00> : vector<128xf32>
    %20 = vector.multi_reduction <add>, %19, %cst_11 [0] : vector<16x128xf32> to vector<128xf32>
    %21 = vector.shape_cast %20 : vector<128xf32> to vector<1x128xf32>
    %cst_12 = arith.constant 1.600000e+01 : f32
    %22 = vector.broadcast %cst_12 : f32 to vector<1x128xf32>
    %23 = arith.divf %21, %22 : vector<1x128xf32>
    %24 = vector.broadcast %16 : vector<1x128xf32> to vector<16x128xf32>
    %25 = arith.subf %12, %24 : vector<16x128xf32>
    %cst_13 = arith.constant 9.99999974E-6 : f32
    %26 = vector.broadcast %cst_13 : f32 to vector<1x128xf32>
    %27 = arith.addf %23, %26 : vector<1x128xf32>
    %28 = math.rsqrt %27 : vector<1x128xf32>
    %29 = vector.broadcast %28 : vector<1x128xf32> to vector<16x128xf32>
    %30 = arith.mulf %25, %29 : vector<16x128xf32>
    %c0_14 = arith.constant 0 : index
    %c0_15 = arith.constant 0 : index
    %31 = vector.load %arg4[%c0_14, %c0_15] : memref<1x128xf32, #tpu.memory_space<vmem>>, vector<1x128xf32>
    %32 = vector.broadcast %31 : vector<1x128xf32> to vector<16x128xf32>
    %33 = arith.mulf %30, %32 : vector<16x128xf32>
    %c0_16 = arith.constant 0 : index
    %c0_17 = arith.constant 0 : index
    %34 = vector.load %arg5[%c0_16, %c0_17] : memref<1x128xf32, #tpu.memory_space<vmem>>, vector<1x128xf32>
    %35 = vector.broadcast %34 : vector<1x128xf32> to vector<16x128xf32>
    %36 = arith.addf %33, %35 : vector<16x128xf32>
    %cst_18 = arith.constant 0.000000e+00 : f32
    %37 = vector.broadcast %cst_18 : f32 to vector<16x128xf32>
    %38 = arith.maximumf %36, %37 : vector<16x128xf32>
    %39 = arith.truncf %38 : vector<16x128xf32> to vector<16x128xbf16>
    %c0_19 = arith.constant 0 : index
    %c0_20 = arith.constant 0 : index
    %40 = vector.load %arg6[%c0_19, %c0_20] : memref<128x128xbf16, #tpu.memory_space<vmem>>, vector<128x128xbf16>
    %cst_21 = arith.constant dense<0.000000e+00> : vector<16x128xf32>
    %41 = tpu.matmul %39, %40, %cst_21 {dimension_numbers = #tpu.dot_dimension_numbers<[1], [0], [0], [1], [0, 0, 1, 1], [], []>} : vector<16x128xbf16>, vector<128x128xbf16>, vector<16x128xf32> -> vector<16x128xf32>
    %c0_22 = arith.constant 0 : index
    %c0_23 = arith.constant 0 : index
    %42 = vector.load %arg7[%c0_22, %c0_23] : memref<1x128xf32, #tpu.memory_space<vmem>>, vector<1x128xf32>
    %43 = vector.broadcast %42 : vector<1x128xf32> to vector<16x128xf32>
    %44 = arith.addf %41, %43 : vector<16x128xf32>
    %cst_24 = arith.constant 0.000000e+00 : f32
    %45 = vector.broadcast %cst_24 : f32 to vector<16x128xf32>
    %46 = arith.maximumf %44, %45 : vector<16x128xf32>
    %47 = arith.truncf %46 : vector<16x128xf32> to vector<16x128xbf16>
    %cst_25 = arith.constant dense<0.000000e+00> : vector<16x128xf32>
    %48 = tpu.matmul %0, %47, %cst_25 {dimension_numbers = #tpu.dot_dimension_numbers<[1], [0], [0], [1], [0, 0, 1, 1], [], []>} : vector<16x16xbf16>, vector<16x128xbf16>, vector<16x128xf32> -> vector<16x128xf32>
    %cst_26 = arith.constant 1.000000e+00 : f32
    %49 = vector.broadcast %cst_26 : f32 to vector<16x128xf32>
    %50 = arith.mulf %49, %46 : vector<16x128xf32>
    %51 = arith.addf %48, %50 : vector<16x128xf32>
    %52 = arith.truncf %51 : vector<16x128xf32> to vector<16x128xbf16>
    %c0_27 = arith.constant 0 : index
    %c0_28 = arith.constant 0 : index
    %53 = vector.load %arg8[%c0_27, %c0_28] : memref<128x128xbf16, #tpu.memory_space<vmem>>, vector<128x128xbf16>
    %cst_29 = arith.constant dense<0.000000e+00> : vector<16x128xf32>
    %54 = tpu.matmul %52, %53, %cst_29 {dimension_numbers = #tpu.dot_dimension_numbers<[1], [0], [0], [1], [0, 0, 1, 1], [], []>} : vector<16x128xbf16>, vector<128x128xbf16>, vector<16x128xf32> -> vector<16x128xf32>
    %c0_30 = arith.constant 0 : index
    %c0_31 = arith.constant 0 : index
    %55 = vector.load %arg9[%c0_30, %c0_31] : memref<1x128xf32, #tpu.memory_space<vmem>>, vector<1x128xf32>
    %56 = vector.broadcast %55 : vector<1x128xf32> to vector<16x128xf32>
    %57 = arith.addf %54, %56 : vector<16x128xf32>
    %cst_32 = arith.constant dense<0.000000e+00> : vector<128xf32>
    %58 = vector.multi_reduction <add>, %57, %cst_32 [0] : vector<16x128xf32> to vector<128xf32>
    %59 = vector.shape_cast %58 : vector<128xf32> to vector<1x128xf32>
    %cst_33 = arith.constant 1.600000e+01 : f32
    %60 = vector.broadcast %cst_33 : f32 to vector<1x128xf32>
    %61 = arith.divf %59, %60 : vector<1x128xf32>
    %62 = vector.broadcast %61 : vector<1x128xf32> to vector<16x128xf32>
    %63 = arith.subf %57, %62 : vector<16x128xf32>
    %64 = arith.mulf %63, %63 : vector<16x128xf32>
    %cst_34 = arith.constant dense<0.000000e+00> : vector<128xf32>
    %65 = vector.multi_reduction <add>, %64, %cst_34 [0] : vector<16x128xf32> to vector<128xf32>
    %66 = vector.shape_cast %65 : vector<128xf32> to vector<1x128xf32>
    %cst_35 = arith.constant 1.600000e+01 : f32
    %67 = vector.broadcast %cst_35 : f32 to vector<1x128xf32>
    %68 = arith.divf %66, %67 : vector<1x128xf32>
    %69 = vector.broadcast %61 : vector<1x128xf32> to vector<16x128xf32>
    %70 = arith.subf %57, %69 : vector<16x128xf32>
    %cst_36 = arith.constant 9.99999974E-6 : f32
    %71 = vector.broadcast %cst_36 : f32 to vector<1x128xf32>
    %72 = arith.addf %68, %71 : vector<1x128xf32>
    %73 = math.rsqrt %72 : vector<1x128xf32>
    %74 = vector.broadcast %73 : vector<1x128xf32> to vector<16x128xf32>
    %75 = arith.mulf %70, %74 : vector<16x128xf32>
    %c0_37 = arith.constant 0 : index
    %c0_38 = arith.constant 0 : index
    %76 = vector.load %arg10[%c0_37, %c0_38] : memref<1x128xf32, #tpu.memory_space<vmem>>, vector<1x128xf32>
    %77 = vector.broadcast %76 : vector<1x128xf32> to vector<16x128xf32>
    %78 = arith.mulf %75, %77 : vector<16x128xf32>
    %c0_39 = arith.constant 0 : index
    %c0_40 = arith.constant 0 : index
    %79 = vector.load %arg11[%c0_39, %c0_40] : memref<1x128xf32, #tpu.memory_space<vmem>>, vector<1x128xf32>
    %80 = vector.broadcast %79 : vector<1x128xf32> to vector<16x128xf32>
    %81 = arith.addf %78, %80 : vector<16x128xf32>
    %cst_41 = arith.constant 0.000000e+00 : f32
    %82 = vector.broadcast %cst_41 : f32 to vector<16x128xf32>
    %83 = arith.maximumf %81, %82 : vector<16x128xf32>
    %84 = arith.truncf %83 : vector<16x128xf32> to vector<16x128xbf16>
    %c0_42 = arith.constant 0 : index
    %c0_43 = arith.constant 0 : index
    %85 = vector.load %arg12[%c0_42, %c0_43] : memref<128x128xbf16, #tpu.memory_space<vmem>>, vector<128x128xbf16>
    %cst_44 = arith.constant dense<0.000000e+00> : vector<16x128xf32>
    %86 = tpu.matmul %84, %85, %cst_44 {dimension_numbers = #tpu.dot_dimension_numbers<[1], [0], [0], [1], [0, 0, 1, 1], [], []>} : vector<16x128xbf16>, vector<128x128xbf16>, vector<16x128xf32> -> vector<16x128xf32>
    %c0_45 = arith.constant 0 : index
    %c0_46 = arith.constant 0 : index
    %87 = vector.load %arg13[%c0_45, %c0_46] : memref<1x128xf32, #tpu.memory_space<vmem>>, vector<1x128xf32>
    %88 = vector.broadcast %87 : vector<1x128xf32> to vector<16x128xf32>
    %89 = arith.addf %86, %88 : vector<16x128xf32>
    %cst_47 = arith.constant 0.000000e+00 : f32
    %90 = vector.broadcast %cst_47 : f32 to vector<16x128xf32>
    %91 = arith.maximumf %89, %90 : vector<16x128xf32>
    %92 = arith.truncf %91 : vector<16x128xf32> to vector<16x128xbf16>
    %cst_48 = arith.constant dense<0.000000e+00> : vector<16x128xf32>
    %93 = tpu.matmul %0, %92, %cst_48 {dimension_numbers = #tpu.dot_dimension_numbers<[1], [0], [0], [1], [0, 0, 1, 1], [], []>} : vector<16x16xbf16>, vector<16x128xbf16>, vector<16x128xf32> -> vector<16x128xf32>
    %cst_49 = arith.constant 1.000000e+00 : f32
    %94 = vector.broadcast %cst_49 : f32 to vector<16x128xf32>
    %95 = arith.mulf %94, %91 : vector<16x128xf32>
    %96 = arith.addf %93, %95 : vector<16x128xf32>
    %97 = arith.truncf %96 : vector<16x128xf32> to vector<16x128xbf16>
    %c0_50 = arith.constant 0 : index
    %c0_51 = arith.constant 0 : index
    %98 = vector.load %arg14[%c0_50, %c0_51] : memref<128x128xbf16, #tpu.memory_space<vmem>>, vector<128x128xbf16>
    %cst_52 = arith.constant dense<0.000000e+00> : vector<16x128xf32>
    %99 = tpu.matmul %97, %98, %cst_52 {dimension_numbers = #tpu.dot_dimension_numbers<[1], [0], [0], [1], [0, 0, 1, 1], [], []>} : vector<16x128xbf16>, vector<128x128xbf16>, vector<16x128xf32> -> vector<16x128xf32>
    %c0_53 = arith.constant 0 : index
    %c0_54 = arith.constant 0 : index
    %100 = vector.load %arg15[%c0_53, %c0_54] : memref<1x128xf32, #tpu.memory_space<vmem>>, vector<1x128xf32>
    %101 = vector.broadcast %100 : vector<1x128xf32> to vector<16x128xf32>
    %102 = arith.addf %99, %101 : vector<16x128xf32>
    %cst_55 = arith.constant dense<0.000000e+00> : vector<128xf32>
    %103 = vector.multi_reduction <add>, %102, %cst_55 [0] : vector<16x128xf32> to vector<128xf32>
    %104 = vector.shape_cast %103 : vector<128xf32> to vector<1x128xf32>
    %cst_56 = arith.constant 1.600000e+01 : f32
    %105 = vector.broadcast %cst_56 : f32 to vector<1x128xf32>
    %106 = arith.divf %104, %105 : vector<1x128xf32>
    %107 = vector.broadcast %106 : vector<1x128xf32> to vector<16x128xf32>
    %108 = arith.subf %102, %107 : vector<16x128xf32>
    %109 = arith.mulf %108, %108 : vector<16x128xf32>
    %cst_57 = arith.constant dense<0.000000e+00> : vector<128xf32>
    %110 = vector.multi_reduction <add>, %109, %cst_57 [0] : vector<16x128xf32> to vector<128xf32>
    %111 = vector.shape_cast %110 : vector<128xf32> to vector<1x128xf32>
    %cst_58 = arith.constant 1.600000e+01 : f32
    %112 = vector.broadcast %cst_58 : f32 to vector<1x128xf32>
    %113 = arith.divf %111, %112 : vector<1x128xf32>
    %114 = vector.broadcast %106 : vector<1x128xf32> to vector<16x128xf32>
    %115 = arith.subf %102, %114 : vector<16x128xf32>
    %cst_59 = arith.constant 9.99999974E-6 : f32
    %116 = vector.broadcast %cst_59 : f32 to vector<1x128xf32>
    %117 = arith.addf %113, %116 : vector<1x128xf32>
    %118 = math.rsqrt %117 : vector<1x128xf32>
    %119 = vector.broadcast %118 : vector<1x128xf32> to vector<16x128xf32>
    %120 = arith.mulf %115, %119 : vector<16x128xf32>
    %c0_60 = arith.constant 0 : index
    %c0_61 = arith.constant 0 : index
    %121 = vector.load %arg16[%c0_60, %c0_61] : memref<1x128xf32, #tpu.memory_space<vmem>>, vector<1x128xf32>
    %122 = vector.broadcast %121 : vector<1x128xf32> to vector<16x128xf32>
    %123 = arith.mulf %120, %122 : vector<16x128xf32>
    %c0_62 = arith.constant 0 : index
    %c0_63 = arith.constant 0 : index
    %124 = vector.load %arg17[%c0_62, %c0_63] : memref<1x128xf32, #tpu.memory_space<vmem>>, vector<1x128xf32>
    %125 = vector.broadcast %124 : vector<1x128xf32> to vector<16x128xf32>
    %126 = arith.addf %123, %125 : vector<16x128xf32>
    %cst_64 = arith.constant 0.000000e+00 : f32
    %127 = vector.broadcast %cst_64 : f32 to vector<16x128xf32>
    %128 = arith.maximumf %126, %127 : vector<16x128xf32>
    %129 = arith.truncf %128 : vector<16x128xf32> to vector<16x128xbf16>
    %c0_65 = arith.constant 0 : index
    %c0_66 = arith.constant 0 : index
    %130 = vector.load %arg18[%c0_65, %c0_66] : memref<128x128xbf16, #tpu.memory_space<vmem>>, vector<128x128xbf16>
    %cst_67 = arith.constant dense<0.000000e+00> : vector<16x128xf32>
    %131 = tpu.matmul %129, %130, %cst_67 {dimension_numbers = #tpu.dot_dimension_numbers<[1], [0], [0], [1], [0, 0, 1, 1], [], []>} : vector<16x128xbf16>, vector<128x128xbf16>, vector<16x128xf32> -> vector<16x128xf32>
    %c0_68 = arith.constant 0 : index
    %c0_69 = arith.constant 0 : index
    %132 = vector.load %arg19[%c0_68, %c0_69] : memref<1x128xf32, #tpu.memory_space<vmem>>, vector<1x128xf32>
    %133 = vector.broadcast %132 : vector<1x128xf32> to vector<16x128xf32>
    %134 = arith.addf %131, %133 : vector<16x128xf32>
    %cst_70 = arith.constant 0.000000e+00 : f32
    %135 = vector.broadcast %cst_70 : f32 to vector<16x128xf32>
    %136 = arith.maximumf %134, %135 : vector<16x128xf32>
    %137 = arith.truncf %136 : vector<16x128xf32> to vector<16x128xbf16>
    %c0_71 = arith.constant 0 : index
    %c0_72 = arith.constant 0 : index
    %138 = vector.load %arg20[%c0_71, %c0_72] : memref<128x128xbf16, #tpu.memory_space<vmem>>, vector<128x128xbf16>
    %cst_73 = arith.constant dense<0.000000e+00> : vector<16x128xf32>
    %139 = tpu.matmul %137, %138, %cst_73 {dimension_numbers = #tpu.dot_dimension_numbers<[1], [0], [0], [1], [0, 0, 1, 1], [], []>} : vector<16x128xbf16>, vector<128x128xbf16>, vector<16x128xf32> -> vector<16x128xf32>
    %c0_74 = arith.constant 0 : index
    %c0_75 = arith.constant 0 : index
    %140 = vector.load %arg21[%c0_74, %c0_75] : memref<1x128xf32, #tpu.memory_space<vmem>>, vector<1x128xf32>
    %141 = vector.broadcast %140 : vector<1x128xf32> to vector<16x128xf32>
    %142 = arith.addf %139, %141 : vector<16x128xf32>
    %cst_76 = arith.constant 0.000000e+00 : f32
    %143 = vector.broadcast %cst_76 : f32 to vector<16x128xf32>
    %144 = arith.maximumf %142, %143 : vector<16x128xf32>
    %145 = arith.truncf %144 : vector<16x128xf32> to vector<16x128xbf16>
    %c0_77 = arith.constant 0 : index
    %c0_78 = arith.constant 0 : index
    %146 = vector.load %arg22[%c0_77, %c0_78] : memref<128x128xbf16, #tpu.memory_space<vmem>>, vector<128x128xbf16>
    %cst_79 = arith.constant dense<0.000000e+00> : vector<16x128xf32>
    %147 = tpu.matmul %145, %146, %cst_79 {dimension_numbers = #tpu.dot_dimension_numbers<[1], [0], [0], [1], [0, 0, 1, 1], [], []>} : vector<16x128xbf16>, vector<128x128xbf16>, vector<16x128xf32> -> vector<16x128xf32>
    %c0_80 = arith.constant 0 : index
    %c0_81 = arith.constant 0 : index
    %148 = vector.load %arg23[%c0_80, %c0_81] : memref<1x128xf32, #tpu.memory_space<vmem>>, vector<1x128xf32>
    %149 = vector.broadcast %148 : vector<1x128xf32> to vector<16x128xf32>
    %150 = arith.addf %147, %149 : vector<16x128xf32>
    %cst_82 = arith.constant 0.000000e+00 : f32
    %151 = vector.broadcast %cst_82 : f32 to vector<16x128xf32>
    %152 = arith.subf %151, %150 : vector<16x128xf32>
    %153 = math.exp %152 : vector<16x128xf32>
    %cst_83 = arith.constant 1.000000e+00 : f32
    %154 = vector.broadcast %cst_83 : f32 to vector<16x128xf32>
    %155 = arith.addf %154, %153 : vector<16x128xf32>
    %156 = tpu.reciprocal %155 {approx = true} : vector<16x128xf32> -> vector<16x128xf32>
    %cst_84 = arith.constant 0.000000e+00 : f32
    %cst_85 = arith.constant 1.000000e+00 : f32
    %157 = vector.broadcast %cst_84 : f32 to vector<16x128xf32>
    %158 = arith.maximumf %157, %156 : vector<16x128xf32>
    %159 = vector.broadcast %cst_85 : f32 to vector<16x128xf32>
    %160 = arith.minimumf %159, %158 : vector<16x128xf32>
    %c0_86 = arith.constant 0 : index
    %c0_87 = arith.constant 0 : index
    %161 = vector.load %arg24[%c0_86, %c0_87] : memref<16x128xf32, #tpu.memory_space<vmem>>, vector<16x128xf32>
    tpu.vector_store %arg24[%c0_86, %c0_87], %160 {strides = array<i32>} : memref<16x128xf32, #tpu.memory_space<vmem>>, vector<16x128xf32>,
    return
  }
}

</mosaic_0001>

<llo_original>
// kernel: gin_forward.1
$region0: #{gin_forward.1}
  #allocation0 [shape = 'u32[]', space=smem, size = 0x4, offset = 0x4, fixed_abs, tag = 'smem constant byte address 0x4 - core index']
  #allocation1 [shape = 'u32[72,128]{1,0:T(1,128)}', space=vmem, size = 0x9000, scoped, tag = 'internal scratch']
  %s0 = inlined_call_operand.vmem [shape: bf16[16,16], index: 0, kind: input, shape index: {}]
  %s1 = inlined_call_operand.vmem [shape: f32[16,128], index: 1, kind: input, shape index: {}]
  %s2 = inlined_call_operand.vmem [shape: bf16[128,128], index: 2, kind: input, shape index: {}]
  %s3 = inlined_call_operand.vmem [shape: f32[1,128], index: 3, kind: input, shape index: {}]
  %s4 = inlined_call_operand.vmem [shape: f32[1,128], index: 4, kind: input, shape index: {}]
  %s5 = inlined_call_operand.vmem [shape: f32[1,128], index: 5, kind: input, shape index: {}]
  %s6 = inlined_call_operand.vmem [shape: bf16[128,128], index: 6, kind: input, shape index: {}]
  %s7 = inlined_call_operand.vmem [shape: f32[1,128], index: 7, kind: input, shape index: {}]
  %s8 = inlined_call_operand.vmem [shape: bf16[128,128], index: 8, kind: input, shape index: {}]
  %s9 = inlined_call_operand.vmem [shape: f32[1,128], index: 9, kind: input, shape index: {}]
  %s10 = inlined_call_operand.vmem [shape: f32[1,128], index: 10, kind: input, shape index: {}]
  %s11 = inlined_call_operand.vmem [shape: f32[1,128], index: 11, kind: input, shape index: {}]
  %s12 = inlined_call_operand.vmem [shape: bf16[128,128], index: 12, kind: input, shape index: {}]
  %s13 = inlined_call_operand.vmem [shape: f32[1,128], index: 13, kind: input, shape index: {}]
  %s14 = inlined_call_operand.vmem [shape: bf16[128,128], index: 14, kind: input, shape index: {}]
  %s15 = inlined_call_operand.vmem [shape: f32[1,128], index: 15, kind: input, shape index: {}]
  %s16 = inlined_call_operand.vmem [shape: f32[1,128], index: 16, kind: input, shape index: {}]
  %s17 = inlined_call_operand.vmem [shape: f32[1,128], index: 17, kind: input, shape index: {}]
  %s18 = inlined_call_operand.vmem [shape: bf16[128,128], index: 18, kind: input, shape index: {}]
  %s19 = inlined_call_operand.vmem [shape: f32[1,128], index: 19, kind: input, shape index: {}]
  %s20 = inlined_call_operand.vmem [shape: bf16[128,128], index: 20, kind: input, shape index: {}]
  %s21 = inlined_call_operand.vmem [shape: f32[1,128], index: 21, kind: input, shape index: {}]
  %s22 = inlined_call_operand.vmem [shape: bf16[128,128], index: 22, kind: input, shape index: {}]
  %s23 = inlined_call_operand.vmem [shape: f32[1,128], index: 23, kind: input, shape index: {}]
  %s24 = inlined_call_operand.vmem [shape: f32[16,128], index: 24, kind: output, shape index: {}]
  %s25 = sld [smem:[#allocation0]]
  $region106: #{gin_forward.1} parent=0
    _
  %s27 = ssub.s32 1, %s25
  %s28 = scalar_select 0, %s27, %s25
  // Predicated region
  $region2: #{gin_forward.1} parent=0 // pred_check
    _
  $region3: #{gin_forward.1} parent=0 // pred_check_branch
    %30 = sbr.rel (0) target = $region5
  $region4: #{gin_forward.1} parent=0 // pred_region
    _
  $region5: #{gin_forward.1} parent=0 // pred_fallthru
    _
  // Predicated region
  $region6: #{gin_forward.1} parent=0 // pred_check
    _
  $region7: #{gin_forward.1} parent=0 // pred_check_branch
    %32 = sbr.rel (0) target = $region9
  $region8: #{gin_forward.1} parent=0 // pred_region
    _
  $region9: #{gin_forward.1} parent=0 // pred_fallthru
    _
  // Predicated region
  $region10: #{gin_forward.1} parent=0 // pred_check
    _
  $region11: #{gin_forward.1} parent=0 // pred_check_branch
    %34 = sbr.rel (0) target = $region13
  $region12: #{gin_forward.1} parent=0 // pred_region
    _
  $region13: #{gin_forward.1} parent=0 // pred_fallthru
    _
  // Predicated region
  $region14: #{gin_forward.1} parent=0 // pred_check
    _
  $region15: #{gin_forward.1} parent=0 // pred_check_branch
    %36 = sbr.rel (0) target = $region17
  $region16: #{gin_forward.1} parent=0 // pred_region
    _
  $region17: #{gin_forward.1} parent=0 // pred_fallthru
    _
  // Predicated region
  $region18: #{gin_forward.1} parent=0 // pred_check
    _
  $region19: #{gin_forward.1} parent=0 // pred_check_branch
    %38 = sbr.rel (0) target = $region21
  $region20: #{gin_forward.1} parent=0 // pred_region
    _
  $region21: #{gin_forward.1} parent=0 // pred_fallthru
    _
  // Predicated region
  $region22: #{gin_forward.1} parent=0 // pred_check
    _
  $region23: #{gin_forward.1} parent=0 // pred_check_branch
    %40 = sbr.rel (0) target = $region25
  $region24: #{gin_forward.1} parent=0 // pred_region
    _
  $region25: #{gin_forward.1} parent=0 // pred_fallthru
    _
  // Predicated region
  $region26: #{gin_forward.1} parent=0 // pred_check
    _
  $region27: #{gin_forward.1} parent=0 // pred_check_branch
    %42 = sbr.rel (0) target = $region29
  $region28: #{gin_forward.1} parent=0 // pred_region
    _
  $region29: #{gin_forward.1} parent=0 // pred_fallthru
    _
  // Predicated region
  $region30: #{gin_forward.1} parent=0 // pred_check
    _
  $region31: #{gin_forward.1} parent=0 // pred_check_branch
    %44 = sbr.rel (0) target = $region33
  $region32: #{gin_forward.1} parent=0 // pred_region
    _
  $region33: #{gin_forward.1} parent=0 // pred_fallthru
    _
  // Predicated region
  $region34: #{gin_forward.1} parent=0 // pred_check
    _
  $region35: #{gin_forward.1} parent=0 // pred_check_branch
    %46 = sbr.rel (0) target = $region37
  $region36: #{gin_forward.1} parent=0 // pred_region
    _
  $region37: #{gin_forward.1} parent=0 // pred_fallthru
    _
  // Predicated region
  $region38: #{gin_forward.1} parent=0 // pred_check
    _
  $region39: #{gin_forward.1} parent=0 // pred_check_branch
    %48 = sbr.rel (0) target = $region41
  $region40: #{gin_forward.1} parent=0 // pred_region
    _
  $region41: #{gin_forward.1} parent=0 // pred_fallthru
    _
  // Predicated region
  $region42: #{gin_forward.1} parent=0 // pred_check
    _
  $region43: #{gin_forward.1} parent=0 // pred_check_branch
    %50 = sbr.rel (0) target = $region45
  $region44: #{gin_forward.1} parent=0 // pred_region
    _
  $region45: #{gin_forward.1} parent=0 // pred_fallthru
    _
  // Predicated region
  $region46: #{gin_forward.1} parent=0 // pred_check
    _
  $region47: #{gin_forward.1} parent=0 // pred_check_branch
    %52 = sbr.rel (0) target = $region49
  $region48: #{gin_forward.1} parent=0 // pred_region
    _
  $region49: #{gin_forward.1} parent=0 // pred_fallthru
    _
  // Predicated region
  $region50: #{gin_forward.1} parent=0 // pred_check
    _
  $region51: #{gin_forward.1} parent=0 // pred_check_branch
    %54 = sbr.rel (0) target = $region53
  $region52: #{gin_forward.1} parent=0 // pred_region
    _
  $region53: #{gin_forward.1} parent=0 // pred_fallthru
    _
  // Predicated region
  $region54: #{gin_forward.1} parent=0 // pred_check
    _
  $region55: #{gin_forward.1} parent=0 // pred_check_branch
    %56 = sbr.rel (0) target = $region57
  $region56: #{gin_forward.1} parent=0 // pred_region
    _
  $region57: #{gin_forward.1} parent=0 // pred_fallthru
    _
  // Predicated region
  $region58: #{gin_forward.1} parent=0 // pred_check
    _
  $region59: #{gin_forward.1} parent=0 // pred_check_branch
    %58 = sbr.rel (0) target = $region61
  $region60: #{gin_forward.1} parent=0 // pred_region
    _
  $region61: #{gin_forward.1} parent=0 // pred_fallthru
    _
  // Predicated region
  $region62: #{gin_forward.1} parent=0 // pred_check
    _
  $region63: #{gin_forward.1} parent=0 // pred_check_branch
    %60 = sbr.rel (0) target = $region65
  $region64: #{gin_forward.1} parent=0 // pred_region
    _
  $region65: #{gin_forward.1} parent=0 // pred_fallthru
    _
  // Predicated region
  $region66: #{gin_forward.1} parent=0 // pred_check
    _
  $region67: #{gin_forward.1} parent=0 // pred_check_branch
    %62 = sbr.rel (0) target = $region69
  $region68: #{gin_forward.1} parent=0 // pred_region
    _
  $region69: #{gin_forward.1} parent=0 // pred_fallthru
    _
  // Predicated region
  $region70: #{gin_forward.1} parent=0 // pred_check
    _
  $region71: #{gin_forward.1} parent=0 // pred_check_branch
    %64 = sbr.rel (0) target = $region73
  $region72: #{gin_forward.1} parent=0 // pred_region
    _
  $region73: #{gin_forward.1} parent=0 // pred_fallthru
    _
  // Predicated region
  $region74: #{gin_forward.1} parent=0 // pred_check
    _
  $region75: #{gin_forward.1} parent=0 // pred_check_branch
    %66 = sbr.rel (0) target = $region77
  $region76: #{gin_forward.1} parent=0 // pred_region
    _
  $region77: #{gin_forward.1} parent=0 // pred_fallthru
    _
  // Predicated region
  $region78: #{gin_forward.1} parent=0 // pred_check
    _
  $region79: #{gin_forward.1} parent=0 // pred_check_branch
    %68 = sbr.rel (0) target = $region81
  $region80: #{gin_forward.1} parent=0 // pred_region
    _
  $region81: #{gin_forward.1} parent=0 // pred_fallthru
    _
  // Predicated region
  $region82: #{gin_forward.1} parent=0 // pred_check
    _
  $region83: #{gin_forward.1} parent=0 // pred_check_branch
    %70 = sbr.rel (0) target = $region85
  $region84: #{gin_forward.1} parent=0 // pred_region
    _
  $region85: #{gin_forward.1} parent=0 // pred_fallthru
    _
  // Predicated region
  $region86: #{gin_forward.1} parent=0 // pred_check
    _
  $region87: #{gin_forward.1} parent=0 // pred_check_branch
    %72 = sbr.rel (0) target = $region89
  $region88: #{gin_forward.1} parent=0 // pred_region
    _
  $region89: #{gin_forward.1} parent=0 // pred_fallthru
    _
  // Predicated region
  $region90: #{gin_forward.1} parent=0 // pred_check
    _
  $region91: #{gin_forward.1} parent=0 // pred_check_branch
    %74 = sbr.rel (0) target = $region93
  $region92: #{gin_forward.1} parent=0 // pred_region
    _
  $region93: #{gin_forward.1} parent=0 // pred_fallthru
    _
  // Predicated region
  $region94: #{gin_forward.1} parent=0 // pred_check
    _
  $region95: #{gin_forward.1} parent=0 // pred_check_branch
    %76 = sbr.rel (0) target = $region97
  $region96: #{gin_forward.1} parent=0 // pred_region
    _
  $region97: #{gin_forward.1} parent=0 // pred_fallthru
    _
  %v78 = vld [vmem:[%s0] sm:$0xf]
  %v79 = vld [vmem:[%s0 + $0x4] sm:$0xf]
  %v80 = vld [vmem:[%s1] sm:$0xff]
  %v81 = vld [vmem:[%s1 + $0x8] sm:$0xff]
  %v82 = vpack.c.bf16 %v81, %v80
  %v85 = vunpack.c.l.b16 %v78
  %v86 = vunpack.c.l.b16 %v79
  %v87 = vpack.c.b16 %v86, %v85
  %vm88 = vcmask 130048
  %v90 = vsel %vm88, %v87, 0
  %92 = vmatpush.bf16.msra.mxu0 0
  %93 = vmatpush.bf16.msra.mxu0 0
  %94 = vmatpush.bf16.msra.mxu0 0
  %95 = vmatpush.bf16.msra.mxu0 0
  %96 = vmatpush.bf16.msra.mxu0 0
  %97 = vmatpush.bf16.msra.mxu0 0
  %98 = vmatpush.bf16.msra.mxu0 0
  %99 = vmatpush.bf16.msra.mxu0 %v82
  %100 = vmatmul.bf16.gmra.mxu0 %v90
  %v101 = vpop.f32.mrf.mxu0
  %v102 = vadd.f32 %v80, %v101
  %v103 = vpop.f32.mrf.mxu0
  %v104 = vadd.f32 %v81, %v103
  %105 = vdwg.mxu0
  %v106 = vpack.c.bf16 %v104, %v102
  %v107 = vld [vmem:[%s2] sm:$0xf]
  %v108 = vld [vmem:[%s2 + $0x4] sm:$0xf]
  %v109 = vld [vmem:[%s2 + $0x8] sm:$0xf]
  %v110 = vld [vmem:[%s2 + $0xc] sm:$0xf]
  %v111 = vld [vmem:[%s2 + $0x10] sm:$0xf]
  %v112 = vld [vmem:[%s2 + $0x14] sm:$0xf]
  %v113 = vld [vmem:[%s2 + $0x18] sm:$0xf]
  %v114 = vld [vmem:[%s2 + $0x1c] sm:$0xf]
  %v115 = vld [vmem:[%s2 + $0x20] sm:$0xf]
  %v116 = vld [vmem:[%s2 + $0x24] sm:$0xf]
  %v117 = vld [vmem:[%s2 + $0x28] sm:$0xf]
  %v118 = vld [vmem:[%s2 + $0x2c] sm:$0xf]
  %v119 = vld [vmem:[%s2 + $0x30] sm:$0xf]
  %v120 = vld [vmem:[%s2 + $0x34] sm:$0xf]
  %v121 = vld [vmem:[%s2 + $0x38] sm:$0xf]
  %v122 = vld [vmem:[%s2 + $0x3c] sm:$0xf]
  %v123 = vld [vmem:[%s3] sm:$0x1]
  %v125 = vperm.slane %v123, 0
  %v143 = vunpack.c.l.b16 %v107
  %v144 = vunpack.c.l.b16 %v108
  %v145 = vunpack.c.l.b16 %v109
  %v146 = vunpack.c.l.b16 %v110
  %v147 = vunpack.c.l.b16 %v111
  %v148 = vunpack.c.l.b16 %v112
  %v149 = vunpack.c.l.b16 %v113
  %v150 = vunpack.c.l.b16 %v114
  %v151 = vunpack.c.l.b16 %v115
  %v152 = vunpack.c.l.b16 %v116
  %v153 = vunpack.c.l.b16 %v117
  %v154 = vunpack.c.l.b16 %v118
  %v155 = vunpack.c.l.b16 %v119
  %v156 = vunpack.c.l.b16 %v120
  %v157 = vunpack.c.l.b16 %v121
  %v158 = vunpack.c.l.b16 %v122
  %v159 = vpack.c.b16 %v144, %v143
  %v160 = vpack.c.b16 %v146, %v145
  %v161 = vpack.c.b16 %v148, %v147
  %v162 = vpack.c.b16 %v150, %v149
  %v163 = vpack.c.b16 %v152, %v151
  %v164 = vpack.c.b16 %v154, %v153
  %v165 = vpack.c.b16 %v156, %v155
  %v166 = vpack.c.b16 %v158, %v157
  %175 = vmatpush.bf16.msra.mxu0 %v166
  %176 = vmatpush.bf16.msra.mxu0 %v165
  %177 = vmatpush.bf16.msra.mxu0 %v164
  %178 = vmatpush.bf16.msra.mxu0 %v163
  %179 = vmatpush.bf16.msra.mxu0 %v162
  %180 = vmatpush.bf16.msra.mxu0 %v161
  %181 = vmatpush.bf16.msra.mxu0 %v160
  %182 = vmatpush.bf16.msra.mxu0 %v159
  %183 = vmatmul.bf16.gmra.mxu0 %v106
  %v184 = vpop.f32.mrf.mxu0
  %v185 = vadd.f32 %v125, %v184
  %v186 = vpop.f32.mrf.mxu0
  %v187 = vadd.f32 %v125, %v186
  %188 = vdwg.mxu0
  %v189 = vadd.f32 %v185, %v187
  %v190 = vrot.slane %v189, 4
  %v191 = vadd.f32 %v189, %v190
  %v192 = vrot.slane %v191, 2
  %v193 = vadd.f32 %v191, %v192
  %v194 = vrot.slane %v193, 1
  %v195 = vadd.f32 %v193, %v194
  %v196 = vrcp.pop 16.0
  %v197 = vmul.f32 16.0, %v196
  %v198 = vsub.f32 1.0, %v197
  %v199 = vmul.f32 %v196, %v198
  %v200 = vadd.f32 %v196, %v199
  %vm201 = vweird.f32 %v196
  %v202 = vsel %vm201, %v196, %v200
  %v203 = vmul.f32 %v195, %v202
  %v204 = vsub.f32 %v185, %v203
  %v205 = vsub.f32 %v187, %v203
  %v206 = vmul.f32 %v204, %v204
  %v207 = vmul.f32 %v205, %v205
  %v208 = vadd.f32 %v206, %v207
  %v209 = vrot.slane %v208, 4
  %v210 = vadd.f32 %v208, %v209
  %v211 = vrot.slane %v210, 2
  %v212 = vadd.f32 %v210, %v211
  %v213 = vrot.slane %v212, 1
  %v214 = vadd.f32 %v212, %v213
  %v215 = vmul.f32 %v214, %v202
  %v216 = vadd.f32 %v215, 1e-05
  %v217 = vrsqrt.pop %v216
  %v218 = vmul.f32 %v217, %v216
  %v219 = vmul.f32 %v218, %v217
  %v220 = vmul.f32 0.5, %v219
  %v221 = vsub.f32 1.5, %v220
  %v222 = vmul.f32 %v217, %v221
  %vm223 = vweird.f32 %v216
  %vm224 = vweird.f32 %v217
  %vm225 = vmor %vm223, %vm224
  %v226 = vsel %vm225, %v217, %v222
  %v227 = vmul.f32 %v204, %v226
  %v228 = vmul.f32 %v205, %v226
  %v229 = vld [vmem:[%s4] sm:$0x1]
  %v231 = vperm.slane %v229, 0
  %v233 = vmul.f32 %v227, %v231
  %v234 = vmul.f32 %v228, %v231
  %v235 = vld [vmem:[%s5] sm:$0x1]
  %v237 = vperm.slane %v235, 0
  %v239 = vadd.f32 %v233, %v237
  %v240 = vadd.f32 %v234, %v237
  %v241 = vmax.f32 %v239, 0.0
  %v242 = vmax.f32 %v240, 0.0
  %v243 = vpack.c.bf16 %v242, %v241
  %v244 = vld [vmem:[%s6] sm:$0xf]
  %v245 = vld [vmem:[%s6 + $0x4] sm:$0xf]
  %v246 = vld [vmem:[%s6 + $0x8] sm:$0xf]
  %v247 = vld [vmem:[%s6 + $0xc] sm:$0xf]
  %v248 = vld [vmem:[%s6 + $0x10] sm:$0xf]
  %v249 = vld [vmem:[%s6 + $0x14] sm:$0xf]
  %v250 = vld [vmem:[%s6 + $0x18] sm:$0xf]
  %v251 = vld [vmem:[%s6 + $0x1c] sm:$0xf]
  %v252 = vld [vmem:[%s6 + $0x20] sm:$0xf]
  %v253 = vld [vmem:[%s6 + $0x24] sm:$0xf]
  %v254 = vld [vmem:[%s6 + $0x28] sm:$0xf]
  %v255 = vld [vmem:[%s6 + $0x2c] sm:$0xf]
  %v256 = vld [vmem:[%s6 + $0x30] sm:$0xf]
  %v257 = vld [vmem:[%s6 + $0x34] sm:$0xf]
  %v258 = vld [vmem:[%s6 + $0x38] sm:$0xf]
  %v259 = vld [vmem:[%s6 + $0x3c] sm:$0xf]
  %v260 = vld [vmem:[%s7] sm:$0x1]
  %v262 = vperm.slane %v260, 0
  %v280 = vunpack.c.l.b16 %v244
  %v281 = vunpack.c.l.b16 %v245
  %v282 = vunpack.c.l.b16 %v246
  %v283 = vunpack.c.l.b16 %v247
  %v284 = vunpack.c.l.b16 %v248
  %v285 = vunpack.c.l.b16 %v249
  %v286 = vunpack.c.l.b16 %v250
  %v287 = vunpack.c.l.b16 %v251
  %v288 = vunpack.c.l.b16 %v252
  %v289 = vunpack.c.l.b16 %v253
  %v290 = vunpack.c.l.b16 %v254
  %v291 = vunpack.c.l.b16 %v255
  %v292 = vunpack.c.l.b16 %v256
  %v293 = vunpack.c.l.b16 %v257
  %v294 = vunpack.c.l.b16 %v258
  %v295 = vunpack.c.l.b16 %v259
  %v296 = vpack.c.b16 %v281, %v280
  %v297 = vpack.c.b16 %v283, %v282
  %v298 = vpack.c.b16 %v285, %v284
  %v299 = vpack.c.b16 %v287, %v286
  %v300 = vpack.c.b16 %v289, %v288
  %v301 = vpack.c.b16 %v291, %v290
  %v302 = vpack.c.b16 %v293, %v292
  %v303 = vpack.c.b16 %v295, %v294
  %312 = vmatpush.bf16.msra.mxu0 %v303
  %313 = vmatpush.bf16.msra.mxu0 %v302
  %314 = vmatpush.bf16.msra.mxu0 %v301
  %315 = vmatpush.bf16.msra.mxu0 %v300
  %316 = vmatpush.bf16.msra.mxu0 %v299
  %317 = vmatpush.bf16.msra.mxu0 %v298
  %318 = vmatpush.bf16.msra.mxu0 %v297
  %319 = vmatpush.bf16.msra.mxu0 %v296
  %320 = vmatmul.bf16.gmra.mxu0 %v243
  %v321 = vpop.f32.mrf.mxu0
  %v322 = vadd.f32 %v262, %v321
  %v323 = vpop.f32.mrf.mxu0
  %v324 = vadd.f32 %v262, %v323
  %325 = vdwg.mxu0
  %v326 = vmax.f32 %v322, 0.0
  %v327 = vmax.f32 %v324, 0.0
  %v328 = vpack.c.bf16 %v327, %v326
  %329 = vmatpush.bf16.msra.mxu0 0
  %330 = vmatpush.bf16.msra.mxu0 0
  %331 = vmatpush.bf16.msra.mxu0 0
  %332 = vmatpush.bf16.msra.mxu0 0
  %333 = vmatpush.bf16.msra.mxu0 0
  %334 = vmatpush.bf16.msra.mxu0 0
  %335 = vmatpush.bf16.msra.mxu0 0
  %336 = vmatpush.bf16.msra.mxu0 %v328
  %337 = vmatmul.bf16.gmra.mxu0 %v90
  %v338 = vpop.f32.mrf.mxu0
  %v339 = vadd.f32 %v326, %v338
  %v340 = vpop.f32.mrf.mxu0
  %v341 = vadd.f32 %v327, %v340
  %342 = vdwg.mxu0
  %v343 = vpack.c.bf16 %v341, %v339
  %v344 = vld [vmem:[%s8] sm:$0xf]
  %v345 = vld [vmem:[%s8 + $0x4] sm:$0xf]
  %v346 = vld [vmem:[%s8 + $0x8] sm:$0xf]
  %v347 = vld [vmem:[%s8 + $0xc] sm:$0xf]
  %v348 = vld [vmem:[%s8 + $0x10] sm:$0xf]
  %v349 = vld [vmem:[%s8 + $0x14] sm:$0xf]
  %v350 = vld [vmem:[%s8 + $0x18] sm:$0xf]
  %v351 = vld [vmem:[%s8 + $0x1c] sm:$0xf]
  %v352 = vld [vmem:[%s8 + $0x20] sm:$0xf]
  %v353 = vld [vmem:[%s8 + $0x24] sm:$0xf]
  %v354 = vld [vmem:[%s8 + $0x28] sm:$0xf]
  %v355 = vld [vmem:[%s8 + $0x2c] sm:$0xf]
  %v356 = vld [vmem:[%s8 + $0x30] sm:$0xf]
  %v357 = vld [vmem:[%s8 + $0x34] sm:$0xf]
  %v358 = vld [vmem:[%s8 + $0x38] sm:$0xf]
  %v359 = vld [vmem:[%s8 + $0x3c] sm:$0xf]
  %v360 = vld [vmem:[%s9] sm:$0x1]
  %v362 = vperm.slane %v360, 0
  %v380 = vunpack.c.l.b16 %v344
  %v381 = vunpack.c.l.b16 %v345
  %v382 = vunpack.c.l.b16 %v346
  %v383 = vunpack.c.l.b16 %v347
  %v384 = vunpack.c.l.b16 %v348
  %v385 = vunpack.c.l.b16 %v349
  %v386 = vunpack.c.l.b16 %v350
  %v387 = vunpack.c.l.b16 %v351
  %v388 = vunpack.c.l.b16 %v352
  %v389 = vunpack.c.l.b16 %v353
  %v390 = vunpack.c.l.b16 %v354
  %v391 = vunpack.c.l.b16 %v355
  %v392 = vunpack.c.l.b16 %v356
  %v393 = vunpack.c.l.b16 %v357
  %v394 = vunpack.c.l.b16 %v358
  %v395 = vunpack.c.l.b16 %v359
  %v396 = vpack.c.b16 %v381, %v380
  %v397 = vpack.c.b16 %v383, %v382
  %v398 = vpack.c.b16 %v385, %v384
  %v399 = vpack.c.b16 %v387, %v386
  %v400 = vpack.c.b16 %v389, %v388
  %v401 = vpack.c.b16 %v391, %v390
  %v402 = vpack.c.b16 %v393, %v392
  %v403 = vpack.c.b16 %v395, %v394
  %412 = vmatpush.bf16.msra.mxu0 %v403
  %413 = vmatpush.bf16.msra.mxu0 %v402
  %414 = vmatpush.bf16.msra.mxu0 %v401
  %415 = vmatpush.bf16.msra.mxu0 %v400
  %416 = vmatpush.bf16.msra.mxu0 %v399
  %417 = vmatpush.bf16.msra.mxu0 %v398
  %418 = vmatpush.bf16.msra.mxu0 %v397
  %419 = vmatpush.bf16.msra.mxu0 %v396
  %420 = vmatmul.bf16.gmra.mxu0 %v343
  %v421 = vpop.f32.mrf.mxu0
  %v422 = vadd.f32 %v362, %v421
  %v423 = vpop.f32.mrf.mxu0
  %v424 = vadd.f32 %v362, %v423
  %425 = vdwg.mxu0
  %v426 = vadd.f32 %v422, %v424
  %v427 = vrot.slane %v426, 4
  %v428 = vadd.f32 %v426, %v427
  %v429 = vrot.slane %v428, 2
  %v430 = vadd.f32 %v428, %v429
  %v431 = vrot.slane %v430, 1
  %v432 = vadd.f32 %v430, %v431
  %v433 = vmul.f32 %v432, %v202
  %v434 = vsub.f32 %v422, %v433
  %v435 = vsub.f32 %v424, %v433
  %v436 = vmul.f32 %v434, %v434
  %v437 = vmul.f32 %v435, %v435
  %v438 = vadd.f32 %v436, %v437
  %v439 = vrot.slane %v438, 4
  %v440 = vadd.f32 %v438, %v439
  %v441 = vrot.slane %v440, 2
  %v442 = vadd.f32 %v440, %v441
  %v443 = vrot.slane %v442, 1
  %v444 = vadd.f32 %v442, %v443
  %v445 = vmul.f32 %v444, %v202
  %v446 = vadd.f32 %v445, 1e-05
  %v447 = vrsqrt.pop %v446
  %v448 = vmul.f32 %v447, %v446
  %v449 = vmul.f32 %v448, %v447
  %v450 = vmul.f32 0.5, %v449
  %v451 = vsub.f32 1.5, %v450
  %v452 = vmul.f32 %v447, %v451
  %vm453 = vweird.f32 %v446
  %vm454 = vweird.f32 %v447
  %vm455 = vmor %vm453, %vm454
  %v456 = vsel %vm455, %v447, %v452
  %v457 = vmul.f32 %v434, %v456
  %v458 = vmul.f32 %v435, %v456
  %v459 = vld [vmem:[%s10] sm:$0x1]
  %v461 = vperm.slane %v459, 0
  %v463 = vmul.f32 %v457, %v461
  %v464 = vmul.f32 %v458, %v461
  %v465 = vld [vmem:[%s11] sm:$0x1]
  %v467 = vperm.slane %v465, 0
  %v469 = vadd.f32 %v463, %v467
  %v470 = vadd.f32 %v464, %v467
  %v471 = vmax.f32 %v469, 0.0
  %v472 = vmax.f32 %v470, 0.0
  %v473 = vpack.c.bf16 %v472, %v471
  %v474 = vld [vmem:[%s12] sm:$0xf]
  %v475 = vld [vmem:[%s12 + $0x4] sm:$0xf]
  %v476 = vld [vmem:[%s12 + $0x8] sm:$0xf]
  %v477 = vld [vmem:[%s12 + $0xc] sm:$0xf]
  %v478 = vld [vmem:[%s12 + $0x10] sm:$0xf]
  %v479 = vld [vmem:[%s12 + $0x14] sm:$0xf]
  %v480 = vld [vmem:[%s12 + $0x18] sm:$0xf]
  %v481 = vld [vmem:[%s12 + $0x1c] sm:$0xf]
  %v482 = vld [vmem:[%s12 + $0x20] sm:$0xf]
  %v483 = vld [vmem:[%s12 + $0x24] sm:$0xf]
  %v484 = vld [vmem:[%s12 + $0x28] sm:$0xf]
  %v485 = vld [vmem:[%s12 + $0x2c] sm:$0xf]
  %v486 = vld [vmem:[%s12 + $0x30] sm:$0xf]
  %v487 = vld [vmem:[%s12 + $0x34] sm:$0xf]
  %v488 = vld [vmem:[%s12 + $0x38] sm:$0xf]
  %v489 = vld [vmem:[%s12 + $0x3c] sm:$0xf]
  %v490 = vld [vmem:[%s13] sm:$0x1]
  %v492 = vperm.slane %v490, 0
  %v510 = vunpack.c.l.b16 %v474
  %v511 = vunpack.c.l.b16 %v475
  %v512 = vunpack.c.l.b16 %v476
  %v513 = vunpack.c.l.b16 %v477
  %v514 = vunpack.c.l.b16 %v478
  %v515 = vunpack.c.l.b16 %v479
  %v516 = vunpack.c.l.b16 %v480
  %v517 = vunpack.c.l.b16 %v481
  %v518 = vunpack.c.l.b16 %v482
  %v519 = vunpack.c.l.b16 %v483
  %v520 = vunpack.c.l.b16 %v484
  %v521 = vunpack.c.l.b16 %v485
  %v522 = vunpack.c.l.b16 %v486
  %v523 = vunpack.c.l.b16 %v487
  %v524 = vunpack.c.l.b16 %v488
  %v525 = vunpack.c.l.b16 %v489
  %v526 = vpack.c.b16 %v511, %v510
  %v527 = vpack.c.b16 %v513, %v512
  %v528 = vpack.c.b16 %v515, %v514
  %v529 = vpack.c.b16 %v517, %v516
  %v530 = vpack.c.b16 %v519, %v518
  %v531 = vpack.c.b16 %v521, %v520
  %v532 = vpack.c.b16 %v523, %v522
  %v533 = vpack.c.b16 %v525, %v524
  %542 = vmatpush.bf16.msra.mxu0 %v533
  %543 = vmatpush.bf16.msra.mxu0 %v532
  %544 = vmatpush.bf16.msra.mxu0 %v531
  %545 = vmatpush.bf16.msra.mxu0 %v530
  %546 = vmatpush.bf16.msra.mxu0 %v529
  %547 = vmatpush.bf16.msra.mxu0 %v528
  %548 = vmatpush.bf16.msra.mxu0 %v527
  %549 = vmatpush.bf16.msra.mxu0 %v526
  %550 = vmatmul.bf16.gmra.mxu0 %v473
  %v551 = vpop.f32.mrf.mxu0
  %v552 = vadd.f32 %v492, %v551
  %v553 = vpop.f32.mrf.mxu0
  %v554 = vadd.f32 %v492, %v553
  %555 = vdwg.mxu0
  %v556 = vmax.f32 %v552, 0.0
  %v557 = vmax.f32 %v554, 0.0
  %v558 = vpack.c.bf16 %v557, %v556
  %559 = vmatpush.bf16.msra.mxu0 0
  %560 = vmatpush.bf16.msra.mxu0 0
  %561 = vmatpush.bf16.msra.mxu0 0
  %562 = vmatpush.bf16.msra.mxu0 0
  %563 = vmatpush.bf16.msra.mxu0 0
  %564 = vmatpush.bf16.msra.mxu0 0
  %565 = vmatpush.bf16.msra.mxu0 0
  %566 = vmatpush.bf16.msra.mxu0 %v558
  %567 = vmatmul.bf16.gmra.mxu0 %v90
  %v568 = vpop.f32.mrf.mxu0
  %v569 = vadd.f32 %v556, %v568
  %v570 = vpop.f32.mrf.mxu0
  %v571 = vadd.f32 %v557, %v570
  %572 = vdwg.mxu0
  %v573 = vpack.c.bf16 %v571, %v569
  %v574 = vld [vmem:[%s14] sm:$0xf]
  %v575 = vld [vmem:[%s14 + $0x4] sm:$0xf]
  %v576 = vld [vmem:[%s14 + $0x8] sm:$0xf]
  %v577 = vld [vmem:[%s14 + $0xc] sm:$0xf]
  %v578 = vld [vmem:[%s14 + $0x10] sm:$0xf]
  %v579 = vld [vmem:[%s14 + $0x14] sm:$0xf]
  %v580 = vld [vmem:[%s14 + $0x18] sm:$0xf]
  %v581 = vld [vmem:[%s14 + $0x1c] sm:$0xf]
  %v582 = vld [vmem:[%s14 + $0x20] sm:$0xf]
  %v583 = vld [vmem:[%s14 + $0x24] sm:$0xf]
  %v584 = vld [vmem:[%s14 + $0x28] sm:$0xf]
  %v585 = vld [vmem:[%s14 + $0x2c] sm:$0xf]
  %v586 = vld [vmem:[%s14 + $0x30] sm:$0xf]
  %v587 = vld [vmem:[%s14 + $0x34] sm:$0xf]
  %v588 = vld [vmem:[%s14 + $0x38] sm:$0xf]
  %v589 = vld [vmem:[%s14 + $0x3c] sm:$0xf]
  %v590 = vld [vmem:[%s15] sm:$0x1]
  %v592 = vperm.slane %v590, 0
  %v610 = vunpack.c.l.b16 %v574
  %v611 = vunpack.c.l.b16 %v575
  %v612 = vunpack.c.l.b16 %v576
  %v613 = vunpack.c.l.b16 %v577
  %v614 = vunpack.c.l.b16 %v578
  %v615 = vunpack.c.l.b16 %v579
  %v616 = vunpack.c.l.b16 %v580
  %v617 = vunpack.c.l.b16 %v581
  %v618 = vunpack.c.l.b16 %v582
  %v619 = vunpack.c.l.b16 %v583
  %v620 = vunpack.c.l.b16 %v584
  %v621 = vunpack.c.l.b16 %v585
  %v622 = vunpack.c.l.b16 %v586
  %v623 = vunpack.c.l.b16 %v587
  %v624 = vunpack.c.l.b16 %v588
  %v625 = vunpack.c.l.b16 %v589
  %v626 = vpack.c.b16 %v611, %v610
  %v627 = vpack.c.b16 %v613, %v612
  %v628 = vpack.c.b16 %v615, %v614
  %v629 = vpack.c.b16 %v617, %v616
  %v630 = vpack.c.b16 %v619, %v618
  %v631 = vpack.c.b16 %v621, %v620
  %v632 = vpack.c.b16 %v623, %v622
  %v633 = vpack.c.b16 %v625, %v624
  %642 = vmatpush.bf16.msra.mxu0 %v633
  %643 = vmatpush.bf16.msra.mxu0 %v632
  %644 = vmatpush.bf16.msra.mxu0 %v631
  %645 = vmatpush.bf16.msra.mxu0 %v630
  %646 = vmatpush.bf16.msra.mxu0 %v629
  %647 = vmatpush.bf16.msra.mxu0 %v628
  %648 = vmatpush.bf16.msra.mxu0 %v627
  %649 = vmatpush.bf16.msra.mxu0 %v626
  %650 = vmatmul.bf16.gmra.mxu0 %v573
  %v651 = vpop.f32.mrf.mxu0
  %v652 = vadd.f32 %v592, %v651
  %v653 = vpop.f32.mrf.mxu0
  %v654 = vadd.f32 %v592, %v653
  %655 = vdwg.mxu0
  %v656 = vadd.f32 %v652, %v654
  %v657 = vrot.slane %v656, 4
  %v658 = vadd.f32 %v656, %v657
  %v659 = vrot.slane %v658, 2
  %v660 = vadd.f32 %v658, %v659
  %v661 = vrot.slane %v660, 1
  %v662 = vadd.f32 %v660, %v661
  %v663 = vmul.f32 %v662, %v202
  %v664 = vsub.f32 %v652, %v663
  %v665 = vsub.f32 %v654, %v663
  %v666 = vmul.f32 %v664, %v664
  %v667 = vmul.f32 %v665, %v665
  %v668 = vadd.f32 %v666, %v667
  %v669 = vrot.slane %v668, 4
  %v670 = vadd.f32 %v668, %v669
  %v671 = vrot.slane %v670, 2
  %v672 = vadd.f32 %v670, %v671
  %v673 = vrot.slane %v672, 1
  %v674 = vadd.f32 %v672, %v673
  %v675 = vmul.f32 %v674, %v202
  %v676 = vadd.f32 %v675, 1e-05
  %v677 = vrsqrt.pop %v676
  %v678 = vmul.f32 %v677, %v676
  %v679 = vmul.f32 %v678, %v677
  %v680 = vmul.f32 0.5, %v679
  %v681 = vsub.f32 1.5, %v680
  %v682 = vmul.f32 %v677, %v681
  %vm683 = vweird.f32 %v676
  %vm684 = vweird.f32 %v677
  %vm685 = vmor %vm683, %vm684
  %v686 = vsel %vm685, %v677, %v682
  %v687 = vmul.f32 %v664, %v686
  %v688 = vmul.f32 %v665, %v686
  %v689 = vld [vmem:[%s16] sm:$0x1]
  %v691 = vperm.slane %v689, 0
  %v693 = vmul.f32 %v687, %v691
  %v694 = vmul.f32 %v688, %v691
  %v695 = vld [vmem:[%s17] sm:$0x1]
  %v697 = vperm.slane %v695, 0
  %v699 = vadd.f32 %v693, %v697
  %v700 = vadd.f32 %v694, %v697
  %v701 = vmax.f32 %v699, 0.0
  %v702 = vmax.f32 %v700, 0.0
  %v703 = vpack.c.bf16 %v702, %v701
  %v704 = vld [vmem:[%s18] sm:$0xf]
  %v705 = vld [vmem:[%s18 + $0x4] sm:$0xf]
  %v706 = vld [vmem:[%s18 + $0x8] sm:$0xf]
  %v707 = vld [vmem:[%s18 + $0xc] sm:$0xf]
  %v708 = vld [vmem:[%s18 + $0x10] sm:$0xf]
  %v709 = vld [vmem:[%s18 + $0x14] sm:$0xf]
  %v710 = vld [vmem:[%s18 + $0x18] sm:$0xf]
  %v711 = vld [vmem:[%s18 + $0x1c] sm:$0xf]
  %v712 = vld [vmem:[%s18 + $0x20] sm:$0xf]
  %v713 = vld [vmem:[%s18 + $0x24] sm:$0xf]
  %v714 = vld [vmem:[%s18 + $0x28] sm:$0xf]
  %v715 = vld [vmem:[%s18 + $0x2c] sm:$0xf]
  %v716 = vld [vmem:[%s18 + $0x30] sm:$0xf]
  %v717 = vld [vmem:[%s18 + $0x34] sm:$0xf]
  %v718 = vld [vmem:[%s18 + $0x38] sm:$0xf]
  %v719 = vld [vmem:[%s18 + $0x3c] sm:$0xf]
  %v720 = vld [vmem:[%s19] sm:$0x1]
  %v722 = vperm.slane %v720, 0
  %v740 = vunpack.c.l.b16 %v704
  %v741 = vunpack.c.l.b16 %v705
  %v742 = vunpack.c.l.b16 %v706
  %v743 = vunpack.c.l.b16 %v707
  %v744 = vunpack.c.l.b16 %v708
  %v745 = vunpack.c.l.b16 %v709
  %v746 = vunpack.c.l.b16 %v710
  %v747 = vunpack.c.l.b16 %v711
  %v748 = vunpack.c.l.b16 %v712
  %v749 = vunpack.c.l.b16 %v713
  %v750 = vunpack.c.l.b16 %v714
  %v751 = vunpack.c.l.b16 %v715
  %v752 = vunpack.c.l.b16 %v716
  %v753 = vunpack.c.l.b16 %v717
  %v754 = vunpack.c.l.b16 %v718
  %v755 = vunpack.c.l.b16 %v719
  %v756 = vpack.c.b16 %v741, %v740
  %v757 = vpack.c.b16 %v743, %v742
  %v758 = vpack.c.b16 %v745, %v744
  %v759 = vpack.c.b16 %v747, %v746
  %v760 = vpack.c.b16 %v749, %v748
  %v761 = vpack.c.b16 %v751, %v750
  %v762 = vpack.c.b16 %v753, %v752
  %v763 = vpack.c.b16 %v755, %v754
  %772 = vmatpush.bf16.msra.mxu0 %v763
  %773 = vmatpush.bf16.msra.mxu0 %v762
  %774 = vmatpush.bf16.msra.mxu0 %v761
  %775 = vmatpush.bf16.msra.mxu0 %v760
  %776 = vmatpush.bf16.msra.mxu0 %v759
  %777 = vmatpush.bf16.msra.mxu0 %v758
  %778 = vmatpush.bf16.msra.mxu0 %v757
  %779 = vmatpush.bf16.msra.mxu0 %v756
  %780 = vmatmul.bf16.gmra.mxu0 %v703
  %v781 = vpop.f32.mrf.mxu0
  %v782 = vadd.f32 %v722, %v781
  %v783 = vpop.f32.mrf.mxu0
  %v784 = vadd.f32 %v722, %v783
  %785 = vdwg.mxu0
  %v786 = vmax.f32 %v782, 0.0
  %v787 = vmax.f32 %v784, 0.0
  %v788 = vpack.c.bf16 %v787, %v786
  %v789 = vld [vmem:[%s20] sm:$0xf]
  %v790 = vld [vmem:[%s20 + $0x4] sm:$0xf]
  %v791 = vld [vmem:[%s20 + $0x8] sm:$0xf]
  %v792 = vld [vmem:[%s20 + $0xc] sm:$0xf]
  %v793 = vld [vmem:[%s20 + $0x10] sm:$0xf]
  %v794 = vld [vmem:[%s20 + $0x14] sm:$0xf]
  %v795 = vld [vmem:[%s20 + $0x18] sm:$0xf]
  %v796 = vld [vmem:[%s20 + $0x1c] sm:$0xf]
  %v797 = vld [vmem:[%s20 + $0x20] sm:$0xf]
  %v798 = vld [vmem:[%s20 + $0x24] sm:$0xf]
  %v799 = vld [vmem:[%s20 + $0x28] sm:$0xf]
  %v800 = vld [vmem:[%s20 + $0x2c] sm:$0xf]
  %v801 = vld [vmem:[%s20 + $0x30] sm:$0xf]
  %v802 = vld [vmem:[%s20 + $0x34] sm:$0xf]
  %v803 = vld [vmem:[%s20 + $0x38] sm:$0xf]
  %v804 = vld [vmem:[%s20 + $0x3c] sm:$0xf]
  %v805 = vld [vmem:[%s21] sm:$0x1]
  %v807 = vperm.slane %v805, 0
  %v825 = vunpack.c.l.b16 %v789
  %v826 = vunpack.c.l.b16 %v790
  %v827 = vunpack.c.l.b16 %v791
  %v828 = vunpack.c.l.b16 %v792
  %v829 = vunpack.c.l.b16 %v793
  %v830 = vunpack.c.l.b16 %v794
  %v831 = vunpack.c.l.b16 %v795
  %v832 = vunpack.c.l.b16 %v796
  %v833 = vunpack.c.l.b16 %v797
  %v834 = vunpack.c.l.b16 %v798
  %v835 = vunpack.c.l.b16 %v799
  %v836 = vunpack.c.l.b16 %v800
  %v837 = vunpack.c.l.b16 %v801
  %v838 = vunpack.c.l.b16 %v802
  %v839 = vunpack.c.l.b16 %v803
  %v840 = vunpack.c.l.b16 %v804
  %v841 = vpack.c.b16 %v826, %v825
  %v842 = vpack.c.b16 %v828, %v827
  %v843 = vpack.c.b16 %v830, %v829
  %v844 = vpack.c.b16 %v832, %v831
  %v845 = vpack.c.b16 %v834, %v833
  %v846 = vpack.c.b16 %v836, %v835
  %v847 = vpack.c.b16 %v838, %v837
  %v848 = vpack.c.b16 %v840, %v839
  %857 = vmatpush.bf16.msra.mxu0 %v848
  %858 = vmatpush.bf16.msra.mxu0 %v847
  %859 = vmatpush.bf16.msra.mxu0 %v846
  %860 = vmatpush.bf16.msra.mxu0 %v845
  %861 = vmatpush.bf16.msra.mxu0 %v844
  %862 = vmatpush.bf16.msra.mxu0 %v843
  %863 = vmatpush.bf16.msra.mxu0 %v842
  %864 = vmatpush.bf16.msra.mxu0 %v841
  %865 = vmatmul.bf16.gmra.mxu0 %v788
  %v866 = vpop.f32.mrf.mxu0
  %v867 = vadd.f32 %v807, %v866
  %v868 = vpop.f32.mrf.mxu0
  %v869 = vadd.f32 %v807, %v868
  %870 = vdwg.mxu0
  %v871 = vmax.f32 %v867, 0.0
  %v872 = vmax.f32 %v869, 0.0
  %v873 = vpack.c.bf16 %v872, %v871
  %v874 = vld [vmem:[%s22] sm:$0xf]
  %v875 = vld [vmem:[%s22 + $0x4] sm:$0xf]
  %v876 = vld [vmem:[%s22 + $0x8] sm:$0xf]
  %v877 = vld [vmem:[%s22 + $0xc] sm:$0xf]
  %v878 = vld [vmem:[%s22 + $0x10] sm:$0xf]
  %v879 = vld [vmem:[%s22 + $0x14] sm:$0xf]
  %v880 = vld [vmem:[%s22 + $0x18] sm:$0xf]
  %v881 = vld [vmem:[%s22 + $0x1c] sm:$0xf]
  %v882 = vld [vmem:[%s22 + $0x20] sm:$0xf]
  %v883 = vld [vmem:[%s22 + $0x24] sm:$0xf]
  %v884 = vld [vmem:[%s22 + $0x28] sm:$0xf]
  %v885 = vld [vmem:[%s22 + $0x2c] sm:$0xf]
  %v886 = vld [vmem:[%s22 + $0x30] sm:$0xf]
  %v887 = vld [vmem:[%s22 + $0x34] sm:$0xf]
  %v888 = vld [vmem:[%s22 + $0x38] sm:$0xf]
  %v889 = vld [vmem:[%s22 + $0x3c] sm:$0xf]
  %v890 = vld [vmem:[%s23] sm:$0x1]
  %v892 = vperm.slane %v890, 0
  %v910 = vunpack.c.l.b16 %v874
  %v911 = vunpack.c.l.b16 %v875
  %v912 = vunpack.c.l.b16 %v876
  %v913 = vunpack.c.l.b16 %v877
  %v914 = vunpack.c.l.b16 %v878
  %v915 = vunpack.c.l.b16 %v879
  %v916 = vunpack.c.l.b16 %v880
  %v917 = vunpack.c.l.b16 %v881
  %v918 = vunpack.c.l.b16 %v882
  %v919 = vunpack.c.l.b16 %v883
  %v920 = vunpack.c.l.b16 %v884
  %v921 = vunpack.c.l.b16 %v885
  %v922 = vunpack.c.l.b16 %v886
  %v923 = vunpack.c.l.b16 %v887
  %v924 = vunpack.c.l.b16 %v888
  %v925 = vunpack.c.l.b16 %v889
  %v926 = vpack.c.b16 %v911, %v910
  %v927 = vpack.c.b16 %v913, %v912
  %v928 = vpack.c.b16 %v915, %v914
  %v929 = vpack.c.b16 %v917, %v916
  %v930 = vpack.c.b16 %v919, %v918
  %v931 = vpack.c.b16 %v921, %v920
  %v932 = vpack.c.b16 %v923, %v922
  %v933 = vpack.c.b16 %v925, %v924
  %942 = vmatpush.bf16.msra.mxu0 %v933
  %943 = vmatpush.bf16.msra.mxu0 %v932
  %944 = vmatpush.bf16.msra.mxu0 %v931
  %945 = vmatpush.bf16.msra.mxu0 %v930
  %946 = vmatpush.bf16.msra.mxu0 %v929
  %947 = vmatpush.bf16.msra.mxu0 %v928
  %948 = vmatpush.bf16.msra.mxu0 %v927
  %949 = vmatpush.bf16.msra.mxu0 %v926
  %950 = vmatmul.bf16.gmra.mxu0 %v873
  %v951 = vpop.f32.mrf.mxu0
  %v952 = vadd.f32 %v892, %v951
  %v953 = vpop.f32.mrf.mxu0
  %v954 = vadd.f32 %v892, %v953
  %955 = vdwg.mxu0
  %v956 = vsub.f32 0.0, %v952
  %v957 = vsub.f32 0.0, %v954
  %v958 = vmul.f32 %v956, 1.442695
  %v959 = vpow.pop %v958
  %v960 = vmul.f32 %v957, 1.442695
  %v961 = vpow.pop %v960
  %v962 = vadd.f32 %v959, 1.0
  %v963 = vadd.f32 %v961, 1.0
  %v964 = vrcp.pop %v962
  %v965 = vrcp.pop %v963
  %v966 = vmax.f32 %v964, 0.0
  %v967 = vmax.f32 %v965, 0.0
  %v968 = vmin.f32 %v966, 1.0
  %v969 = vmin.f32 %v967, 1.0
  %970 = vst [vmem:[%s24] sm:$0xff] %v968
  %971 = vst [vmem:[%s24 + $0x8] sm:$0xff] %v969
  // Predicated region
  $region98: #{gin_forward.1} parent=0 // pred_check
    _
  $region99: #{gin_forward.1} parent=0 // pred_check_branch
    %973 = sbr.rel (0) target = $region101
  $region100: #{gin_forward.1} parent=0 // pred_region
    _
  $region101: #{gin_forward.1} parent=0 // pred_fallthru
    _
  // Predicated region
  $region102: #{gin_forward.1} parent=0 // pred_check
    _
  $region103: #{gin_forward.1} parent=0 // pred_check_branch
    %975 = sbr.rel (0) target = $region105
  $region104: #{gin_forward.1} parent=0 // pred_region
    _
  $region105: #{gin_forward.1} parent=0 // pred_fallthru
    _

</llo_original>
